<compile_context>
chip_gen: v6e
topology: v6e:2x2x1
jax: 0.10.0
libtpu: 0.0.40
codegen_flags: <defaults>
</compile_context>

<pallas_src>
import functools

import jax
import jax.numpy as jnp
from jax.experimental import pallas as pl
from jax.experimental.pallas import tpu as pltpu


# Output-row layout of the fused head (rows of the (16, tile_n) output tile).
# ReLU-ed heads first so a single `row < N_RELU_ROWS` mask implements out_act.
HEAD_ORDER = (
    ("scoring_head", 1, True),    # row 0
    ("width_head", 1, True),      # row 1
    ("depth_head", 1, True),      # row 2
    ("rotation_head", 6, False),  # rows 3..8
)
OUT_PAD = 16          # pad 9 -> 16 output rows (sublane-aligned)
N_RELU_ROWS = 3


# ----------------------------------------------------------------------------
# Pallas kernel: fused 4-head MLP in channels-on-sublane / points-on-lane layout
# ----------------------------------------------------------------------------
def _fused_heads_kernel(x_ref, w1_ref, b1_ref, w2_ref, b2_ref, w3_ref, b3_ref,
                        o_ref, *, n_relu_rows, compute_dtype):
    x = x_ref[0].astype(compute_dtype)                     # (C, tile_n)

    # layer 1: (4C, C) @ (C, tile_n) -> (4C, tile_n), bias+ReLU in f32
    h = jnp.dot(w1_ref[...].astype(compute_dtype), x,
                preferred_element_type=jnp.float32) + b1_ref[...]
    h = jnp.maximum(h, 0.0)

    # layer 2 (block-diagonal): (8C, 4C) @ (4C, tile_n) -> (8C, tile_n)
    h = jnp.dot(w2_ref[...].astype(compute_dtype), h.astype(compute_dtype),
                preferred_element_type=jnp.float32) + b2_ref[...]
    h = jnp.maximum(h, 0.0)

    # layer 3 (concatenated heads): (16, 8C) @ (8C, tile_n) -> (16, tile_n)
    o = jnp.dot(w3_ref[...].astype(compute_dtype), h.astype(compute_dtype),
                preferred_element_type=jnp.float32) + b3_ref[...]

    # final ReLU only for the scoring/width/depth rows (rotation has none)
    rows = jax.lax.broadcasted_iota(jnp.int32, (o.shape[0], 1), 0)
    o = jnp.where(rows < n_relu_rows, jnp.maximum(o, 0.0), o)

    o_ref[0] = o.astype(o_ref.dtype)


def fused_heads_forward(seed_features, fused, *, n_relu_rows=N_RELU_ROWS,
                        tile_n=512, compute_dtype=jnp.bfloat16):
    """seed_features: (B, C, N) NCW slab.  Returns (B, OUT_PAD, N) f32."""
    B, C, N = seed_features.shape
    mid_all = fused["w1"].shape[0]     # 4*C
    hid_all = fused["w2"].shape[0]     # 8*C
    out_pad = fused["w3"].shape[0]     # 16

    # lane tile: multiple of 128, as large as useful; keep grid >= 2 for v7x.
    t = min(tile_n, pl.cdiv(N, 128) * 128)
    t = max(128, (t // 128) * 128)
    while B * pl.cdiv(N, t) < 2 and t > 128:
        t = max(128, (t // 2) // 128 * 128)

    n_pad = pl.cdiv(N, t) * t
    x = seed_features
    if n_pad != N:
        x = jnp.pad(x, ((0, 0), (0, 0), (0, n_pad - N)))

    grid = (B, n_pad // t)
    const = lambda b, n: (0, 0)
    kernel = functools.partial(_fused_heads_kernel,
                               n_relu_rows=n_relu_rows,
                               compute_dtype=compute_dtype)
    out = pl.pallas_call(
        kernel,
        out_shape=jax.ShapeDtypeStruct((B, out_pad, n_pad), jnp.float32),
        grid_spec=pltpu.PrefetchScalarGridSpec(
            num_scalar_prefetch=0,
            grid=grid,
            in_specs=[
                pl.BlockSpec((1, C, t), lambda b, n: (b, 0, n)),   # seed tile
                pl.BlockSpec((mid_all, C), const),                 # W1 fused
                pl.BlockSpec((mid_all, 1), const),                 # b1 fused
                pl.BlockSpec((hid_all, mid_all), const),           # W2 block-diag
                pl.BlockSpec((hid_all, 1), const),                 # b2 fused
                pl.BlockSpec((out_pad, hid_all), const),           # W3 concat
                pl.BlockSpec((out_pad, 1), const),                 # b3 concat
            ],
            out_specs=pl.BlockSpec((1, out_pad, t), lambda b, n: (b, 0, n)),
        ),
        compiler_params=pltpu.CompilerParams(
            dimension_semantics=("parallel", "parallel")),
    )(x, fused["w1"], fused["b1"], fused["w2"], fused["b2"],
      fused["w3"], fused["b3"])
    return out[:, :, :N]


# ----------------------------------------------------------------------------
# Parameter init (PyTorch Conv1d fan-in uniform init, weights stored (out, in))
# ----------------------------------------------------------------------------
def init_head_params(key, in_dim, out_dim):
    hid = in_dim * 2
    ks = jax.random.split(key, 6)

    def uni(k, shape, fan_in):
        bound = fan_in ** -0.5
        return jax.random.uniform(k, shape, jnp.float32, -bound, bound)

    return {
        "w1": uni(ks[0], (in_dim, in_dim), in_dim),
        "b1": uni(ks[1], (in_dim,), in_dim),
        "w2": uni(ks[2], (hid, in_dim), in_dim),
        "b2": uni(ks[3], (hid,), in_dim),
        "w3": uni(ks[4], (out_dim, hid), hid),
        "b3": uni(ks[5], (out_dim,), hid),
    }


def init_ignet_params(key, seed_feat_dim):
    k_score, k_rot, k_width, k_depth = jax.random.split(key, 4)
    return {
        "scoring_head": init_head_params(k_score, seed_feat_dim, 1),
        "rotation_head": init_head_params(k_rot, seed_feat_dim, 6),
        "width_head": init_head_params(k_width, seed_feat_dim, 1),
        "depth_head": init_head_params(k_depth, seed_feat_dim, 1),
    }


def fuse_ignet_heads(params, seed_feat_dim, out_pad=OUT_PAD):
    """Concatenate / block-diagonalize the 4 heads into one 3-layer MLP."""
    C = seed_feat_dim
    hid = 2 * C
    H = len(HEAD_ORDER)

    w1 = jnp.concatenate([params[n]["w1"] for n, _, _ in HEAD_ORDER], axis=0)
    b1 = jnp.concatenate([params[n]["b1"] for n, _, _ in HEAD_ORDER])[:, None]

    w2 = jnp.zeros((H * hid, H * C), jnp.float32)
    for h, (n, _, _) in enumerate(HEAD_ORDER):
        w2 = w2.at[h * hid:(h + 1) * hid, h * C:(h + 1) * C].set(params[n]["w2"])
    b2 = jnp.concatenate([params[n]["b2"] for n, _, _ in HEAD_ORDER])[:, None]

    w3 = jnp.zeros((out_pad, H * hid), jnp.float32)
    b3 = jnp.zeros((out_pad, 1), jnp.float32)
    row = 0
    for h, (n, od, _) in enumerate(HEAD_ORDER):
        w3 = w3.at[row:row + od, h * hid:(h + 1) * hid].set(params[n]["w3"])
        b3 = b3.at[row:row + od, 0].set(params[n]["b3"])
        row += od
    return {"w1": w1, "b1": b1, "w2": w2, "b2": b2, "w3": w3, "b3": b3}


# ----------------------------------------------------------------------------
# IGNet forward (heads only; backbone / label matching are untranslatable)
# ----------------------------------------------------------------------------
def ignet_forward(end_points, params, *, tile_n=512, compute_dtype=jnp.bfloat16):
    # TODO(synk): MinkUNet14D sparse-voxel backbone (MinkowskiEngine SparseTensor)
    #             has no Pallas equivalent; seed_features are taken as given input.
    seed_features = end_points["seed_features"]            # (B, C, N) -- NCW
    B, C, N = seed_features.shape

    fused = fuse_ignet_heads(params, C)
    out = fused_heads_forward(seed_features, fused, tile_n=tile_n,
                              compute_dtype=compute_dtype)  # (B, 16, N)

    # heads in PyTorch return (B, num_seed, out_dim) after transpose(1, 2);
    # the slices/transposes below touch only the (tiny) head outputs.
    end_points["grasp_score_pred"] = jnp.transpose(out[:, 0:1, :], (0, 2, 1))
    end_points["grasp_width_pred"] = jnp.transpose(out[:, 1:2, :], (0, 2, 1))
    end_points["grasp_depth_pred"] = jnp.transpose(out[:, 2:3, :], (0, 2, 1))
    end_points["grasp_rot_pred"] = jnp.transpose(out[:, 3:9, :], (0, 2, 1))

    # TODO(synk): match_grasp_labels (knn_points, gather-based label matching,
    #             bucketize) is training-only supervision glue, not implemented.
    return end_points


# ----------------------------------------------------------------------------
# Reference (pure jnp, same bf16-matmul / f32-accumulate numerics)
# ----------------------------------------------------------------------------
def _head_ref(x_pc, p, final_relu, compute_dtype=jnp.bfloat16):
    cd = compute_dtype
    h = jnp.dot(x_pc.astype(cd), p["w1"].T.astype(cd),
                preferred_element_type=jnp.float32) + p["b1"]
    h = jnp.maximum(h, 0.0)
    h = jnp.dot(h.astype(cd), p["w2"].T.astype(cd),
                preferred_element_type=jnp.float32) + p["b2"]
    h = jnp.maximum(h, 0.0)
    o = jnp.dot(h.astype(cd), p["w3"].T.astype(cd),
                preferred_element_type=jnp.float32) + p["b3"]
    return jnp.maximum(o, 0.0) if final_relu else o


if __name__ == "__main__":
    key = jax.random.PRNGKey(0)
    k_params, k_feat, k_xyz = jax.random.split(key, 3)

    B, N, C = 2, 256, 32          # small demo shapes: batch=2, 256 points, 32-dim feat
    params = init_ignet_params(k_params, seed_feat_dim=C)

    end_points = {
        "point_clouds": jax.random.normal(k_xyz, (B, N, 3), jnp.float32),
        # stand-in for backbone output: (B, C, N), NCW like seed_features in torch
        "seed_features": jax.random.normal(k_feat, (B, C, N), jnp.float32),
    }

    out = ignet_forward(dict(end_points), params)
    for name in ("grasp_score_pred", "grasp_rot_pred",
                 "grasp_width_pred", "grasp_depth_pred"):
        jax.block_until_ready(out[name])

    # correctness check against plain-JAX reference (same bf16/f32 numerics)
    x_pc = jnp.transpose(end_points["seed_features"], (0, 2, 1)).reshape(B * N, C)
    refs = {
        "grasp_score_pred": _head_ref(x_pc, params["scoring_head"], True).reshape(B, N, 1),
        "grasp_rot_pred": _head_ref(x_pc, params["rotation_head"], False).reshape(B, N, 6),
        "grasp_width_pred": _head_ref(x_pc, params["width_head"], True).reshape(B, N, 1),
        "grasp_depth_pred": _head_ref(x_pc, params["depth_head"], True).reshape(B, N, 1),
    }
    for name, ref in refs.items():
        assert jnp.allclose(out[name], ref, atol=2e-3, rtol=2e-3), name

    print("KERNEL_OK")
</pallas_src>

<mosaic_0001>
module attributes {stable_mosaic.version = 11 : i64} {
  func.func @_fused_heads_kernel(%arg0: i32, %arg1: i32, %arg2: memref<1x32x256xf32, #tpu.memory_space<vmem>>, %arg3: memref<128x32xf32, #tpu.memory_space<vmem>>, %arg4: memref<128x1xf32, #tpu.memory_space<vmem>>, %arg5: memref<256x128xf32, #tpu.memory_space<vmem>>, %arg6: memref<256x1xf32, #tpu.memory_space<vmem>>, %arg7: memref<16x256xf32, #tpu.memory_space<vmem>>, %arg8: memref<16x1xf32, #tpu.memory_space<vmem>>, %arg9: memref<1x16x256xf32, #tpu.memory_space<vmem>>) attributes {dimension_semantics = [#tpu.dimension_semantics<parallel>, #tpu.dimension_semantics<parallel>], iteration_bounds = array<i64: 2, 1>, scalar_prefetch = 0 : i64, scratch_operands = 0 : i64, tpu.core_type = #tpu.core_type<tc>, window_params = [{transform_indices = @transform_0, window_bounds = array<i64: 1, 32, 256>}, {pipeline_mode = #tpu.pipeline_mode<synchronous>, transform_indices = @transform_1, window_bounds = array<i64: 128, 32>}, {pipeline_mode = #tpu.pipeline_mode<synchronous>, transform_indices = @transform_2, window_bounds = array<i64: 128, 1>}, {pipeline_mode = #tpu.pipeline_mode<synchronous>, transform_indices = @transform_3, window_bounds = array<i64: 256, 128>}, {pipeline_mode = #tpu.pipeline_mode<synchronous>, transform_indices = @transform_4, window_bounds = array<i64: 256, 1>}, {pipeline_mode = #tpu.pipeline_mode<synchronous>, transform_indices = @transform_5, window_bounds = array<i64: 16, 256>}, {pipeline_mode = #tpu.pipeline_mode<synchronous>, transform_indices = @transform_6, window_bounds = array<i64: 16, 1>}, {transform_indices = @transform_7, window_bounds = array<i64: 1, 16, 256>}]} {
    %c0 = arith.constant 0 : index
    %c0_0 = arith.constant 0 : index
    %c0_1 = arith.constant 0 : index
    %0 = vector.load %arg2[%c0, %c0_0, %c0_1] : memref<1x32x256xf32, #tpu.memory_space<vmem>>, vector<1x32x256xf32>
    %1 = vector.shape_cast %0 : vector<1x32x256xf32> to vector<32x256xf32>
    %2 = arith.truncf %1 : vector<32x256xf32> to vector<32x256xbf16>
    %c0_2 = arith.constant 0 : index
    %c0_3 = arith.constant 0 : index
    %3 = vector.load %arg3[%c0_2, %c0_3] : memref<128x32xf32, #tpu.memory_space<vmem>>, vector<128x32xf32>
    %4 = arith.truncf %3 : vector<128x32xf32> to vector<128x32xbf16>
    %cst = arith.constant dense<0.000000e+00> : vector<128x256xf32>
    %5 = tpu.matmul %4, %2, %cst {dimension_numbers = #tpu.dot_dimension_numbers<[1], [0], [0], [1], [0, 0, 1, 1], [], []>} : vector<128x32xbf16>, vector<32x256xbf16>, vector<128x256xf32> -> vector<128x256xf32>
    %c0_4 = arith.constant 0 : index
    %c0_5 = arith.constant 0 : index
    %6 = vector.load %arg4[%c0_4, %c0_5] : memref<128x1xf32, #tpu.memory_space<vmem>>, vector<128x1xf32>
    %7 = vector.broadcast %6 : vector<128x1xf32> to vector<128x256xf32>
    %8 = arith.addf %5, %7 : vector<128x256xf32>
    %cst_6 = arith.constant 0.000000e+00 : f32
    %9 = vector.broadcast %cst_6 : f32 to vector<128x256xf32>
    %10 = arith.maximumf %8, %9 : vector<128x256xf32>
    %c0_7 = arith.constant 0 : index
    %c0_8 = arith.constant 0 : index
    %11 = vector.load %arg5[%c0_7, %c0_8] : memref<256x128xf32, #tpu.memory_space<vmem>>, vector<256x128xf32>
    %12 = arith.truncf %11 : vector<256x128xf32> to vector<256x128xbf16>
    %13 = arith.truncf %10 : vector<128x256xf32> to vector<128x256xbf16>
    %cst_9 = arith.constant dense<0.000000e+00> : vector<256x256xf32>
    %14 = tpu.matmul %12, %13, %cst_9 {dimension_numbers = #tpu.dot_dimension_numbers<[1], [0], [0], [1], [0, 0, 1, 1], [], []>} : vector<256x128xbf16>, vector<128x256xbf16>, vector<256x256xf32> -> vector<256x256xf32>
    %c0_10 = arith.constant 0 : index
    %c0_11 = arith.constant 0 : index
    %15 = vector.load %arg6[%c0_10, %c0_11] : memref<256x1xf32, #tpu.memory_space<vmem>>, vector<256x1xf32>
    %16 = vector.broadcast %15 : vector<256x1xf32> to vector<256x256xf32>
    %17 = arith.addf %14, %16 : vector<256x256xf32>
    %cst_12 = arith.constant 0.000000e+00 : f32
    %18 = vector.broadcast %cst_12 : f32 to vector<256x256xf32>
    %19 = arith.maximumf %17, %18 : vector<256x256xf32>
    %c0_13 = arith.constant 0 : index
    %c0_14 = arith.constant 0 : index
    %20 = vector.load %arg7[%c0_13, %c0_14] : memref<16x256xf32, #tpu.memory_space<vmem>>, vector<16x256xf32>
    %21 = arith.truncf %20 : vector<16x256xf32> to vector<16x256xbf16>
    %22 = arith.truncf %19 : vector<256x256xf32> to vector<256x256xbf16>
    %cst_15 = arith.constant dense<0.000000e+00> : vector<16x256xf32>
    %23 = tpu.matmul %21, %22, %cst_15 {dimension_numbers = #tpu.dot_dimension_numbers<[1], [0], [0], [1], [0, 0, 1, 1], [], []>} : vector<16x256xbf16>, vector<256x256xbf16>, vector<16x256xf32> -> vector<16x256xf32>
    %c0_16 = arith.constant 0 : index
    %c0_17 = arith.constant 0 : index
    %24 = vector.load %arg8[%c0_16, %c0_17] : memref<16x1xf32, #tpu.memory_space<vmem>>, vector<16x1xf32>
    %25 = vector.broadcast %24 : vector<16x1xf32> to vector<16x256xf32>
    %26 = arith.addf %23, %25 : vector<16x256xf32>
    %27 = tpu.iota {dimensions = array<i32: 0>} : vector<16x1xi32>
    %c3_i32 = arith.constant 3 : i32
    %28 = vector.broadcast %c3_i32 : i32 to vector<16x1xi32>
    %29 = arith.cmpi slt, %27, %28 : vector<16x1xi32>
    %cst_18 = arith.constant 0.000000e+00 : f32
    %30 = vector.broadcast %cst_18 : f32 to vector<16x256xf32>
    %31 = arith.maximumf %26, %30 : vector<16x256xf32>
    %32 = vector.shape_cast %29 : vector<16x1xi1> to vector<16x1xi1>
    %33 = vector.broadcast %32 : vector<16x1xi1> to vector<16x256xi1>
    %34 = arith.select %33, %31, %26 : vector<16x256xi1>, vector<16x256xf32>
    %c0_19 = arith.constant 0 : index
    %c0_20 = arith.constant 0 : index
    %c0_21 = arith.constant 0 : index
    %35 = vector.load %arg9[%c0_19, %c0_20, %c0_21] : memref<1x16x256xf32, #tpu.memory_space<vmem>>, vector<1x16x256xf32>
    %36 = vector.shape_cast %35 : vector<1x16x256xf32> to vector<16x256xf32>
    %37 = vector.shape_cast %34 : vector<16x256xf32> to vector<1x16x256xf32>
    tpu.vector_store %arg9[%c0_19, %c0_20, %c0_21], %37 {strides = array<i32>} : memref<1x16x256xf32, #tpu.memory_space<vmem>>, vector<1x16x256xf32>,
    return
  }
  func.func @transform_0(%arg0: i32, %arg1: i32) -> (i32, i32, i32) {
    %c0_i32 = arith.constant 0 : i32
    %c0_i32_0 = arith.constant 0 : i32
    return %arg0, %c0_i32, %arg1 : i32, i32, i32
  }
  func.func @transform_1(%arg0: i32, %arg1: i32) -> (i32, i32) {
    %c0_i32 = arith.constant 0 : i32
    %c0_i32_0 = arith.constant 0 : i32
    %c0_i32_1 = arith.constant 0 : i32
    return %c0_i32, %c0_i32_0 : i32, i32
  }
  func.func @transform_2(%arg0: i32, %arg1: i32) -> (i32, i32) {
    %c0_i32 = arith.constant 0 : i32
    %c0_i32_0 = arith.constant 0 : i32
    %c0_i32_1 = arith.constant 0 : i32
    return %c0_i32, %c0_i32_0 : i32, i32
  }
  func.func @transform_3(%arg0: i32, %arg1: i32) -> (i32, i32) {
    %c0_i32 = arith.constant 0 : i32
    %c0_i32_0 = arith.constant 0 : i32
    %c0_i32_1 = arith.constant 0 : i32
    return %c0_i32, %c0_i32_0 : i32, i32
  }
  func.func @transform_4(%arg0: i32, %arg1: i32) -> (i32, i32) {
    %c0_i32 = arith.constant 0 : i32
    %c0_i32_0 = arith.constant 0 : i32
    %c0_i32_1 = arith.constant 0 : i32
    return %c0_i32, %c0_i32_0 : i32, i32
  }
  func.func @transform_5(%arg0: i32, %arg1: i32) -> (i32, i32) {
    %c0_i32 = arith.constant 0 : i32
    %c0_i32_0 = arith.constant 0 : i32
    %c0_i32_1 = arith.constant 0 : i32
    return %c0_i32, %c0_i32_0 : i32, i32
  }
  func.func @transform_6(%arg0: i32, %arg1: i32) -> (i32, i32) {
    %c0_i32 = arith.constant 0 : i32
    %c0_i32_0 = arith.constant 0 : i32
    %c0_i32_1 = arith.constant 0 : i32
    return %c0_i32, %c0_i32_0 : i32, i32
  }
  func.func @transform_7(%arg0: i32, %arg1: i32) -> (i32, i32, i32) {
    %c0_i32 = arith.constant 0 : i32
    %c0_i32_0 = arith.constant 0 : i32
    return %arg0, %c0_i32, %arg1 : i32, i32, i32
  }
}

</mosaic_0001>

<llo_original>
// kernel: tpu_custom_call.1
$region0: #{tpu_custom_call.1}
  #allocation0 [shape = 'u32[]', space=smem, size = 0x4, offset = 0x4, fixed_abs, tag = 'smem constant byte address 0x4 - core index']
  #allocation1 [shape = 'u32[144,128]{1,0:T(1,128)}', space=vmem, size = 0x12000, scoped, tag = 'internal scratch']
  %s0 = inlined_call_operand.vmem [shape: f32[2,32,256], index: 0, kind: input, shape index: {}]
  %s1 = inlined_call_operand.vmem [shape: f32[128,32], index: 1, kind: input, shape index: {}]
  %s2 = inlined_call_operand.vmem [shape: f32[128,1], index: 2, kind: input, shape index: {}]
  %s3 = inlined_call_operand.vmem [shape: f32[256,128], index: 3, kind: input, shape index: {}]
  %s4 = inlined_call_operand.vmem [shape: f32[256,1], index: 4, kind: input, shape index: {}]
  %s5 = inlined_call_operand.vmem [shape: f32[16,256], index: 5, kind: input, shape index: {}]
  %s6 = inlined_call_operand.vmem [shape: f32[16,1], index: 6, kind: input, shape index: {}]
  %s7 = inlined_call_operand.hbm [shape: f32[2,16,256], index: 7, kind: output, shape index: {}]
  %s8 = sld [smem:[#allocation0]]
  $region61: #{tpu_custom_call.1} parent=0
    _
  %s10 = ssub.s32 1, %s8
  %s11 = scalar_select 0, %s10, %s8
  $region1: #{tpu_custom_call.1} parent=0
    #allocation2 [shape = 'u8[32768]{0}', space=vmem, size = 0x8000, scoped, tag = 'output window, operand 0']
    #allocation3 [shape = 's32[2]{0}', space=sflag, size = 0x8, scoped, tag = 'scoped memory for tpu_custom_call.1']
    %12 = vsyncpa [#allocation3], 0
    %s13 = scalar_lea.sflag [#allocation3], 1
    %14 = vsyncpa %s13, 0
    loop: start=0, step=1, limit=4
    $region2: #{tpu_custom_call.1} parent=1 // loop_pre_header
      _
    $region3: #{tpu_custom_call.1} parent=1 // loop_header
      %s16 = sphi 0, %s20
      %p17 = scmp.ge.s32.totalorder %s16, 4
      %s23 = sphi 0, %s35
      %s24 = sphi 0, %s31
      %s25 = sphi 0, %s23
      %s26 = sphi 0, %s24
      %s27 = sphi 0, %s25
      %s28 = sphi 0, %s26
      %s40 = sphi 0, %s42
      %s43 = sphi 0, %s40
      %s44 = sphi 0, %s43
      %s60 = sphi 0, %s44
      %s64 = sphi 0, %s64
      %s66 = sphi 0, %s64
      %s67 = sphi 0, %s66
      %s81 = sphi 0, %s67
      %s85 = sphi 0, %s85
      %s87 = sphi 0, %s85
      %s88 = sphi 0, %s87
      %s102 = sphi 0, %s88
      %s106 = sphi 0, %s106
      %s108 = sphi 0, %s106
      %s109 = sphi 0, %s108
      %s123 = sphi 0, %s109
      %s127 = sphi 0, %s127
      %s129 = sphi 0, %s127
      %s130 = sphi 0, %s129
      %s144 = sphi 0, %s130
      %s148 = sphi 0, %s148
      %s150 = sphi 0, %s148
      %s151 = sphi 0, %s150
      %s165 = sphi 0, %s151
      %s169 = sphi 0, %s169
      %s171 = sphi 0, %s169
      %s172 = sphi 0, %s171
      %s186 = sphi 0, %s172
      %s194 = sphi 0, %s196
      %s197 = sphi 0, %s194
      %s198 = sphi 0, %s197
      %s214 = sphi 0, %s198
    $region4: #{tpu_custom_call.1} parent=1 // loop_header_branch
      %19 = sbr.rel (%p17) target = $region8
    $region5: #{tpu_custom_call.1} parent=1 // loop_body
      %s21 = ssub.s32 %s16, 1
      %s22 = ssub.s32 %s16, 2
      %s29 = sadd.s32 1, %s24
      %p30 = scmp.ge.s32.totalorder %s29, 1
      %s31 = scalar_select %p30, 0, %s29
      %s32 = sadd.s32 1, %s23
      %s33 = scalar_select %p30, %s32, %s23
      %p34 = scmp.ge.s32.totalorder %s33, 2
      %s35 = scalar_select %p34, 0, %s33
      %s36 = ssub.s32 %s23, %s35
      %s37 = ssub.s32 %s24, %s31
      %s38 = sor.u32 %s36, %s37
      %p39 = scmp.eq.s32.totalorder %s38, 0
      %s41 = sadd.s32 %s40, 1
      %s42 = scalar_select %p39, %s40, %s41
      %p45 = pneg %p39
      %p46 = scmp.eq.s32.totalorder %s16, 1
      %p47 = por %p45, %p46
      %p48 = scmp.ne.s32.totalorder %s40, %s43
      %p49 = scmp.eq.s32.totalorder %s16, 0
      %p50 = por %p48, %p49
      %p51 = scmp.ne.s32.totalorder %s40, %s43
      %p52 = scmp.eq.s32.totalorder %s21, 1
      %p53 = por %p51, %p52
      %p54 = scmp.ne.s32.totalorder %s43, %s44
      %p55 = scmp.eq.s32.totalorder %s21, 0
      %p56 = por %p54, %p55
      %p57 = scmp.ne.s32.totalorder %s43, %s44
      %p58 = scmp.eq.s32.totalorder %s22, 1
      %p59 = por %p57, %p58
      %p61 = scmp.ne.s32.totalorder %s44, %s60
      %p62 = scmp.eq.s32.totalorder %s22, 0
      %p63 = por %p61, %p62
      %s65 = sadd.s32 %s64, 1
      %p68 = scmp.eq.s32.totalorder %s16, 1
      %p69 = scmp.ne.s32.totalorder %s64, %s66
      %p70 = scmp.eq.s32.totalorder %s16, 0
      %p71 = por %p69, %p70
      %p72 = scmp.ne.s32.totalorder %s64, %s66
      %p73 = scmp.eq.s32.totalorder %s21, 1
      %p74 = por %p72, %p73
      %p75 = scmp.ne.s32.totalorder %s66, %s67
      %p76 = scmp.eq.s32.totalorder %s21, 0
      %p77 = por %p75, %p76
      %p78 = scmp.ne.s32.totalorder %s66, %s67
      %p79 = scmp.eq.s32.totalorder %s22, 1
      %p80 = por %p78, %p79
      %p82 = scmp.ne.s32.totalorder %s67, %s81
      %p83 = scmp.eq.s32.totalorder %s22, 0
      %p84 = por %p82, %p83
      %s86 = sadd.s32 %s85, 1
      %p89 = scmp.eq.s32.totalorder %s16, 1
      %p90 = scmp.ne.s32.totalorder %s85, %s87
      %p91 = scmp.eq.s32.totalorder %s16, 0
      %p92 = por %p90, %p91
      %p93 = scmp.ne.s32.totalorder %s85, %s87
      %p94 = scmp.eq.s32.totalorder %s21, 1
      %p95 = por %p93, %p94
      %p96 = scmp.ne.s32.totalorder %s87, %s88
      %p97 = scmp.eq.s32.totalorder %s21, 0
      %p98 = por %p96, %p97
      %p99 = scmp.ne.s32.totalorder %s87, %s88
      %p100 = scmp.eq.s32.totalorder %s22, 1
      %p101 = por %p99, %p100
      %p103 = scmp.ne.s32.totalorder %s88, %s102
      %p104 = scmp.eq.s32.totalorder %s22, 0
      %p105 = por %p103, %p104
      %s107 = sadd.s32 %s106, 1
      %p110 = scmp.eq.s32.totalorder %s16, 1
      %p111 = scmp.ne.s32.totalorder %s106, %s108
      %p112 = scmp.eq.s32.totalorder %s16, 0
      %p113 = por %p111, %p112
      %p114 = scmp.ne.s32.totalorder %s106, %s108
      %p115 = scmp.eq.s32.totalorder %s21, 1
      %p116 = por %p114, %p115
      %p117 = scmp.ne.s32.totalorder %s108, %s109
      %p118 = scmp.eq.s32.totalorder %s21, 0
      %p119 = por %p117, %p118
      %p120 = scmp.ne.s32.totalorder %s108, %s109
      %p121 = scmp.eq.s32.totalorder %s22, 1
      %p122 = por %p120, %p121
      %p124 = scmp.ne.s32.totalorder %s109, %s123
      %p125 = scmp.eq.s32.totalorder %s22, 0
      %p126 = por %p124, %p125
      %s128 = sadd.s32 %s127, 1
      %p131 = scmp.eq.s32.totalorder %s16, 1
      %p132 = scmp.ne.s32.totalorder %s127, %s129
      %p133 = scmp.eq.s32.totalorder %s16, 0
      %p134 = por %p132, %p133
      %p135 = scmp.ne.s32.totalorder %s127, %s129
      %p136 = scmp.eq.s32.totalorder %s21, 1
      %p137 = por %p135, %p136
      %p138 = scmp.ne.s32.totalorder %s129, %s130
      %p139 = scmp.eq.s32.totalorder %s21, 0
      %p140 = por %p138, %p139
      %p141 = scmp.ne.s32.totalorder %s129, %s130
      %p142 = scmp.eq.s32.totalorder %s22, 1
      %p143 = por %p141, %p142
      %p145 = scmp.ne.s32.totalorder %s130, %s144
      %p146 = scmp.eq.s32.totalorder %s22, 0
      %p147 = por %p145, %p146
      %s149 = sadd.s32 %s148, 1
      %p152 = scmp.eq.s32.totalorder %s16, 1
      %p153 = scmp.ne.s32.totalorder %s148, %s150
      %p154 = scmp.eq.s32.totalorder %s16, 0
      %p155 = por %p153, %p154
      %p156 = scmp.ne.s32.totalorder %s148, %s150
      %p157 = scmp.eq.s32.totalorder %s21, 1
      %p158 = por %p156, %p157
      %p159 = scmp.ne.s32.totalorder %s150, %s151
      %p160 = scmp.eq.s32.totalorder %s21, 0
      %p161 = por %p159, %p160
      %p162 = scmp.ne.s32.totalorder %s150, %s151
      %p163 = scmp.eq.s32.totalorder %s22, 1
      %p164 = por %p162, %p163
      %p166 = scmp.ne.s32.totalorder %s151, %s165
      %p167 = scmp.eq.s32.totalorder %s22, 0
      %p168 = por %p166, %p167
      %s170 = sadd.s32 %s169, 1
      %p173 = scmp.eq.s32.totalorder %s16, 1
      %p174 = scmp.ne.s32.totalorder %s169, %s171
      %p175 = scmp.eq.s32.totalorder %s16, 0
      %p176 = por %p174, %p175
      %p177 = scmp.ne.s32.totalorder %s169, %s171
      %p178 = scmp.eq.s32.totalorder %s21, 1
      %p179 = por %p177, %p178
      %p180 = scmp.ne.s32.totalorder %s171, %s172
      %p181 = scmp.eq.s32.totalorder %s21, 0
      %p182 = por %p180, %p181
      %p183 = scmp.ne.s32.totalorder %s171, %s172
      %p184 = scmp.eq.s32.totalorder %s22, 1
      %p185 = por %p183, %p184
      %p187 = scmp.ne.s32.totalorder %s172, %s186
      %p188 = scmp.eq.s32.totalorder %s22, 0
      %p189 = por %p187, %p188
      %s190 = ssub.s32 %s23, %s35
      %s191 = ssub.s32 %s24, %s31
      %s192 = sor.u32 %s190, %s191
      %p193 = scmp.eq.s32.totalorder %s192, 0
      %s195 = sadd.s32 %s194, 1
      %s196 = scalar_select %p193, %s194, %s195
      %p199 = pneg %p193
      %p200 = scmp.eq.s32.totalorder %s16, 1
      %p201 = por %p199, %p200
      %p202 = scmp.ne.s32.totalorder %s194, %s197
      %p203 = scmp.eq.s32.totalorder %s16, 0
      %p204 = por %p202, %p203
      %p205 = scmp.ne.s32.totalorder %s194, %s197
      %p206 = scmp.eq.s32.totalorder %s21, 1
      %p207 = por %p205, %p206
      %p208 = scmp.ne.s32.totalorder %s197, %s198
      %p209 = scmp.eq.s32.totalorder %s21, 0
      %p210 = por %p208, %p209
      %p211 = scmp.ne.s32.totalorder %s197, %s198
      %p212 = scmp.eq.s32.totalorder %s22, 1
      %p213 = por %p211, %p212
      %p215 = scmp.ne.s32.totalorder %s198, %s214
      %p216 = scmp.eq.s32.totalorder %s22, 0
      %p217 = por %p215, %p216
      %p218 = scmp.le.s32.totalorder 1, %s16
      %p219 = scmp.lt.s32.totalorder %s16, 3
      %p220 = pnand %p218, %p219
      %p221 = pneg %p220
      // Predicated region
      $region9: #{tpu_custom_call.1} parent=5 // pred_check
        _
      $region10: #{tpu_custom_call.1} parent=5 // pred_check_branch
        %223 = sbr.rel (%p220) target = $region12
      $region11: #{tpu_custom_call.1} parent=5 // pred_region
        %s224 = ssub.s32 %s16, 1
        // Predicated region
        $region13: #{tpu_custom_call.1} parent=11 // pred_check
          %p225 = pneg %p77
        $region14: #{tpu_custom_call.1} parent=11 // pred_check_branch
          %227 = sbr.rel (%p225) target = $region16
        $region15: #{tpu_custom_call.1} parent=11 // pred_region
          _
        $region16: #{tpu_custom_call.1} parent=11 // pred_fallthru
          _
        // Predicated region
        $region17: #{tpu_custom_call.1} parent=11 // pred_check
          %p228 = pneg %p98
        $region18: #{tpu_custom_call.1} parent=11 // pred_check_branch
          %230 = sbr.rel (%p228) target = $region20
        $region19: #{tpu_custom_call.1} parent=11 // pred_region
          _
        $region20: #{tpu_custom_call.1} parent=11 // pred_fallthru
          _
        // Predicated region
        $region21: #{tpu_custom_call.1} parent=11 // pred_check
          %p231 = pneg %p119
        $region22: #{tpu_custom_call.1} parent=11 // pred_check_branch
          %233 = sbr.rel (%p231) target = $region24
        $region23: #{tpu_custom_call.1} parent=11 // pred_region
          _
        $region24: #{tpu_custom_call.1} parent=11 // pred_fallthru
          _
        // Predicated region
        $region25: #{tpu_custom_call.1} parent=11 // pred_check
          %p234 = pneg %p140
        $region26: #{tpu_custom_call.1} parent=11 // pred_check_branch
          %236 = sbr.rel (%p234) target = $region28
        $region27: #{tpu_custom_call.1} parent=11 // pred_region
          _
        $region28: #{tpu_custom_call.1} parent=11 // pred_fallthru
          _
        // Predicated region
        $region29: #{tpu_custom_call.1} parent=11 // pred_check
          %p237 = pneg %p161
        $region30: #{tpu_custom_call.1} parent=11 // pred_check_branch
          %239 = sbr.rel (%p237) target = $region32
        $region31: #{tpu_custom_call.1} parent=11 // pred_region
          _
        $region32: #{tpu_custom_call.1} parent=11 // pred_fallthru
          _
        // Predicated region
        $region33: #{tpu_custom_call.1} parent=11 // pred_check
          %p240 = pneg %p182
        $region34: #{tpu_custom_call.1} parent=11 // pred_check_branch
          %242 = sbr.rel (%p240) target = $region36
        $region35: #{tpu_custom_call.1} parent=11 // pred_region
          _
        $region36: #{tpu_custom_call.1} parent=11 // pred_fallthru
          _
      $region12: #{tpu_custom_call.1} parent=5 // pred_fallthru
        _
      %p243 = scmp.lt.s32.totalorder %s16, 2
      // Predicated region
      $region37: #{tpu_custom_call.1} parent=5 // pred_check
        %p244 = pneg %p243
      $region38: #{tpu_custom_call.1} parent=5 // pred_check_branch
        %246 = sbr.rel (%p244) target = $region40
      $region39: #{tpu_custom_call.1} parent=5 // pred_region
        // Predicated region
        $region41: #{tpu_custom_call.1} parent=39 // pred_check
          %p247 = pneg %p50
        $region42: #{tpu_custom_call.1} parent=39 // pred_check_branch
          %249 = sbr.rel (%p247) target = $region44
        $region43: #{tpu_custom_call.1} parent=39 // pred_region
          %s250 = smul.u32 2, %s24
          %p251 = scmp.lt.s32.totalorder %s23, 1
          %s252 = scalar_select %p251, %s23, 1
          %p253 = scmp.lt.s32.totalorder %s250, 1
          %s254 = scalar_select %p253, %s250, 1
          %s255 = smul.addr %s252, 8
          %s256 = sadd.s32 %s254, %s255
          %s257 = smul.addr %s256, 8
          %s258 = scalar_lea.vmem %s0, %s257
          %s259 = smul.u32 2, %s24
        $region44: #{tpu_custom_call.1} parent=39 // pred_fallthru
          _
      $region40: #{tpu_custom_call.1} parent=5 // pred_fallthru
        _
      %p260 = scmp.le.s32.totalorder 1, %s16
      %p261 = scmp.lt.s32.totalorder %s16, 3
      %p262 = pnand %p260, %p261
      %p263 = pneg %p262
      // Predicated region
      $region45: #{tpu_custom_call.1} parent=5 // pred_check
        _
      $region46: #{tpu_custom_call.1} parent=5 // pred_check_branch
        %265 = sbr.rel (%p262) target = $region48
      $region47: #{tpu_custom_call.1} parent=5 // pred_region
        %s266 = ssub.s32 %s16, 1
        %s267 = smul.u32 2, %s26
        %p268 = scmp.lt.s32.totalorder %s25, 1
        %s269 = scalar_select %p268, %s25, 1
        %p270 = scmp.lt.s32.totalorder %s267, 1
        %s271 = scalar_select %p270, %s267, 1
        %s272 = smul.addr %s269, 8
        %s273 = sadd.s32 %s271, %s272
        %s274 = smul.addr %s273, 8
        %s275 = scalar_lea.vmem %s0, %s274
        %p276 = pneg %p56
        %p277 = pneg %p53
        %p278 = pneg %p77
        %p279 = pneg %p74
        %p280 = pneg %p98
        %p281 = pneg %p95
        %p282 = pneg %p119
        %p283 = pneg %p116
        %p284 = pneg %p140
        %p285 = pneg %p137
        %p286 = pneg %p161
        %p287 = pneg %p158
        %p288 = pneg %p182
        %p289 = pneg %p179
        %p290 = pneg %p210
        %p291 = pneg %p207
        %s292 = sand.u32 %s197, 1
        %s293 = scalar_lea.sflag [#allocation3], %s292
        %s294 = sand.u32 %s197, 1
        %s295 = smul.addr %s294, 32
        %s296 = scalar_lea.vmem [#allocation2], %s295
        %s297 = smul.u32 2, %s26
        %p298 = scmp.lt.s32.totalorder %s25, 1
        %s299 = scalar_select %p298, %s25, 1
        %p300 = scmp.lt.s32.totalorder %s297, 1
        %s301 = scalar_select %p300, %s297, 1
        %s302 = smul.addr %s299, 8
        %s303 = sadd.s32 %s301, %s302
        %s304 = smul.addr %s303, 8
        %s305 = scalar_lea.vmem %s0, %s304
        %s306 = smul.u32 2, %s26
        %s307 = smul.u32 2, %s26
        %v309 = vld [vmem:[%s305] sm:$0xff]
        %v310 = vld [vmem:[%s305 + $0x8] sm:$0xff]
        %v311 = vld [vmem:[%s305 + $0x10] sm:$0xff]
        %v312 = vld [vmem:[%s305 + $0x18] sm:$0xff]
        %v313 = vld [vmem:[%s305 + $0x20] sm:$0xff]
        %v314 = vld [vmem:[%s305 + $0x28] sm:$0xff]
        %v315 = vld [vmem:[%s305 + $0x30] sm:$0xff]
        %v316 = vld [vmem:[%s305 + $0x38] sm:$0xff]
        %v317 = vpack.c.bf16 %v311, %v309
        %v318 = vpack.c.bf16 %v312, %v310
        %v319 = vpack.c.bf16 %v315, %v313
        %v320 = vpack.c.bf16 %v316, %v314
        %v321 = vld [vmem:[%s1] sm:$0xff]
        %v322 = vld [vmem:[%s1 + $0x8] sm:$0xff]
        %v323 = vld [vmem:[%s1 + $0x10] sm:$0xff]
        %v324 = vld [vmem:[%s1 + $0x18] sm:$0xff]
        %v325 = vld [vmem:[%s1 + $0x20] sm:$0xff]
        %v326 = vld [vmem:[%s1 + $0x28] sm:$0xff]
        %v327 = vld [vmem:[%s1 + $0x30] sm:$0xff]
        %v328 = vld [vmem:[%s1 + $0x38] sm:$0xff]
        %v329 = vld [vmem:[%s1 + $0x40] sm:$0xff]
        %v330 = vld [vmem:[%s1 + $0x48] sm:$0xff]
        %v331 = vld [vmem:[%s1 + $0x50] sm:$0xff]
        %v332 = vld [vmem:[%s1 + $0x58] sm:$0xff]
        %v333 = vld [vmem:[%s1 + $0x60] sm:$0xff]
        %v334 = vld [vmem:[%s1 + $0x68] sm:$0xff]
        %v335 = vld [vmem:[%s1 + $0x70] sm:$0xff]
        %v336 = vld [vmem:[%s1 + $0x78] sm:$0xff]
        %v337 = vpack.c.bf16 %v322, %v321
        %v338 = vpack.c.bf16 %v324, %v323
        %v339 = vpack.c.bf16 %v326, %v325
        %v340 = vpack.c.bf16 %v328, %v327
        %v341 = vpack.c.bf16 %v330, %v329
        %v342 = vpack.c.bf16 %v332, %v331
        %v343 = vpack.c.bf16 %v334, %v333
        %v344 = vpack.c.bf16 %v336, %v335
        %v345 = vld [vmem:[%s2] sm:$0xff]
        %v346 = vld [vmem:[%s2 + $0x8] sm:$0xff]
        %v347 = vld [vmem:[%s2 + $0x10] sm:$0xff]
        %v348 = vld [vmem:[%s2 + $0x18] sm:$0xff]
        %v349 = vld [vmem:[%s2 + $0x20] sm:$0xff]
        %v350 = vld [vmem:[%s2 + $0x28] sm:$0xff]
        %v351 = vld [vmem:[%s2 + $0x30] sm:$0xff]
        %v352 = vld [vmem:[%s2 + $0x38] sm:$0xff]
        %v353 = vld [vmem:[%s2 + $0x40] sm:$0xff]
        %v354 = vld [vmem:[%s2 + $0x48] sm:$0xff]
        %v355 = vld [vmem:[%s2 + $0x50] sm:$0xff]
        %v356 = vld [vmem:[%s2 + $0x58] sm:$0xff]
        %v357 = vld [vmem:[%s2 + $0x60] sm:$0xff]
        %v358 = vld [vmem:[%s2 + $0x68] sm:$0xff]
        %v359 = vld [vmem:[%s2 + $0x70] sm:$0xff]
        %v360 = vld [vmem:[%s2 + $0x78] sm:$0xff]
        %362 = vset.pattern.permute.xlu0 0
        %363 = vperm.xlu0 %362, %v345
        %v364 = vpop.permute.xlu0 %363
        %367 = vset.pattern.permute.xlu0 0
        %368 = vperm.xlu0 %367, %v346
        %v369 = vpop.permute.xlu0 %368
        %372 = vset.pattern.permute.xlu0 0
        %373 = vperm.xlu0 %372, %v347
        %v374 = vpop.permute.xlu0 %373
        %377 = vset.pattern.permute.xlu0 0
        %378 = vperm.xlu0 %377, %v348
        %v379 = vpop.permute.xlu0 %378
        %382 = vset.pattern.permute.xlu0 0
        %383 = vperm.xlu0 %382, %v349
        %v384 = vpop.permute.xlu0 %383
        %387 = vset.pattern.permute.xlu0 0
        %388 = vperm.xlu0 %387, %v350
        %v389 = vpop.permute.xlu0 %388
        %392 = vset.pattern.permute.xlu0 0
        %393 = vperm.xlu0 %392, %v351
        %v394 = vpop.permute.xlu0 %393
        %397 = vset.pattern.permute.xlu0 0
        %398 = vperm.xlu0 %397, %v352
        %v399 = vpop.permute.xlu0 %398
        %402 = vset.pattern.permute.xlu0 0
        %403 = vperm.xlu0 %402, %v353
        %v404 = vpop.permute.xlu0 %403
        %407 = vset.pattern.permute.xlu0 0
        %408 = vperm.xlu0 %407, %v354
        %v409 = vpop.permute.xlu0 %408
        %412 = vset.pattern.permute.xlu0 0
        %413 = vperm.xlu0 %412, %v355
        %v414 = vpop.permute.xlu0 %413
        %417 = vset.pattern.permute.xlu0 0
        %418 = vperm.xlu0 %417, %v356
        %v419 = vpop.permute.xlu0 %418
        %422 = vset.pattern.permute.xlu0 0
        %423 = vperm.xlu0 %422, %v357
        %v424 = vpop.permute.xlu0 %423
        %427 = vset.pattern.permute.xlu0 0
        %428 = vperm.xlu0 %427, %v358
        %v429 = vpop.permute.xlu0 %428
        %432 = vset.pattern.permute.xlu0 0
        %433 = vperm.xlu0 %432, %v359
        %v434 = vpop.permute.xlu0 %433
        %437 = vset.pattern.permute.xlu0 0
        %438 = vperm.xlu0 %437, %v360
        %v439 = vpop.permute.xlu0 %438
        %vm441 = vcmask 261120
        %v443 = vsel %vm441, %v337, 0
        %v446 = vsel %vm441, %v338, 0
        %v449 = vsel %vm441, %v339, 0
        %v452 = vsel %vm441, %v340, 0
        %v455 = vsel %vm441, %v341, 0
        %v458 = vsel %vm441, %v342, 0
        %v461 = vsel %vm441, %v343, 0
        %v464 = vsel %vm441, %v344, 0
        %466 = vmatprep.subr.bf16.mxu0 0
        %467 = vmatpush1.bf16.msra.mxu0 0
        %468 = vmatprep.subr.bf16.mxu0 0
        %469 = vmatpush1.bf16.msra.mxu0 0
        %470 = vmatprep.subr.bf16.mxu0 0
        %471 = vmatpush1.bf16.msra.mxu0 0
        %472 = vmatprep.subr.bf16.mxu0 0
        %473 = vmatpush1.bf16.msra.mxu0 0
        %474 = vmatprep.subr.bf16.mxu0 0
        %475 = vmatpush1.bf16.msra.mxu0 0
        %476 = vmatprep.subr.bf16.mxu0 0
        %477 = vmatpush1.bf16.msra.mxu0 0
        %478 = vmatprep.subr.bf16.mxu0 %v320
        %479 = vmatpush1.bf16.msra.mxu0 %v319
        %480 = vmatprep.subr.bf16.mxu0 %v318
        %481 = vmatpush1.bf16.msra.mxu0 %v317
        %482 = vmatprep.subr.bf16.mxu0 0
        %483 = vmatpush2.bf16.msra.mxu0 0
        %484 = vmatprep.subr.bf16.mxu0 0
        %485 = vmatpush2.bf16.msra.mxu0 0
        %486 = vmatprep.subr.bf16.mxu0 0
        %487 = vmatpush2.bf16.msra.mxu0 0
        %488 = vmatprep.subr.bf16.mxu0 0
        %489 = vmatpush2.bf16.msra.mxu0 0
        %490 = vmatprep.subr.bf16.mxu0 0
        %491 = vmatpush2.bf16.msra.mxu0 0
        %492 = vmatprep.subr.bf16.mxu0 0
        %493 = vmatpush2.bf16.msra.mxu0 0
        %494 = vmatprep.subr.bf16.mxu0 0
        %495 = vmatpush2.bf16.msra.mxu0 0
        %496 = vmatprep.subr.bf16.mxu0 0
        %497 = vmatpush2.bf16.msra.mxu0 0
        %498 = vmatprep.mubr.bf16.mxu0 0
        %499 = vmatmul.mubr.bf16.gmra.mxu0 %v443
        %v500 = vpop.f32.mrf.mxu0
        %v501 = vadd.f32 %v364, %v500
        %v502 = vpop.f32.mrf.mxu0
        %v503 = vadd.f32 %v364, %v502
        %v504 = vpop.f32.mrf.mxu0
        %v505 = vadd.f32 %v369, %v504
        %v506 = vpop.f32.mrf.mxu0
        %v507 = vadd.f32 %v369, %v506
        %508 = vmatprep.mubr.bf16.mxu0 0
        %509 = vmatmul.mubr.bf16.gmra.mxu0 %v446
        %v510 = vpop.f32.mrf.mxu0
        %v511 = vadd.f32 %v374, %v510
        %v512 = vpop.f32.mrf.mxu0
        %v513 = vadd.f32 %v374, %v512
        %v514 = vpop.f32.mrf.mxu0
        %v515 = vadd.f32 %v379, %v514
        %v516 = vpop.f32.mrf.mxu0
        %v517 = vadd.f32 %v379, %v516
        %518 = vmatprep.mubr.bf16.mxu0 0
        %519 = vmatmul.mubr.bf16.gmra.mxu0 %v449
        %v520 = vpop.f32.mrf.mxu0
        %v521 = vadd.f32 %v384, %v520
        %v522 = vpop.f32.mrf.mxu0
        %v523 = vadd.f32 %v384, %v522
        %v524 = vpop.f32.mrf.mxu0
        %v525 = vadd.f32 %v389, %v524
        %v526 = vpop.f32.mrf.mxu0
        %v527 = vadd.f32 %v389, %v526
        %528 = vmatprep.mubr.bf16.mxu0 0
        %529 = vmatmul.mubr.bf16.gmra.mxu0 %v452
        %v530 = vpop.f32.mrf.mxu0
        %v531 = vadd.f32 %v394, %v530
        %v532 = vpop.f32.mrf.mxu0
        %v533 = vadd.f32 %v394, %v532
        %v534 = vpop.f32.mrf.mxu0
        %v535 = vadd.f32 %v399, %v534
        %v536 = vpop.f32.mrf.mxu0
        %v537 = vadd.f32 %v399, %v536
        %538 = vmatprep.mubr.bf16.mxu0 0
        %539 = vmatmul.mubr.bf16.gmra.mxu0 %v455
        %v540 = vpop.f32.mrf.mxu0
        %v541 = vadd.f32 %v404, %v540
        %v542 = vpop.f32.mrf.mxu0
        %v543 = vadd.f32 %v404, %v542
        %v544 = vpop.f32.mrf.mxu0
        %v545 = vadd.f32 %v409, %v544
        %v546 = vpop.f32.mrf.mxu0
        %v547 = vadd.f32 %v409, %v546
        %548 = vmatprep.mubr.bf16.mxu0 0
        %549 = vmatmul.mubr.bf16.gmra.mxu0 %v458
        %v550 = vpop.f32.mrf.mxu0
        %v551 = vadd.f32 %v414, %v550
        %v552 = vpop.f32.mrf.mxu0
        %v553 = vadd.f32 %v414, %v552
        %v554 = vpop.f32.mrf.mxu0
        %v555 = vadd.f32 %v419, %v554
        %v556 = vpop.f32.mrf.mxu0
        %v557 = vadd.f32 %v419, %v556
        %558 = vmatprep.mubr.bf16.mxu0 0
        %559 = vmatmul.mubr.bf16.gmra.mxu0 %v461
        %v560 = vpop.f32.mrf.mxu0
        %v561 = vadd.f32 %v424, %v560
        %v562 = vpop.f32.mrf.mxu0
        %v563 = vadd.f32 %v424, %v562
        %v564 = vpop.f32.mrf.mxu0
        %v565 = vadd.f32 %v429, %v564
        %v566 = vpop.f32.mrf.mxu0
        %v567 = vadd.f32 %v429, %v566
        %568 = vmatprep.mubr.bf16.mxu0 0
        %569 = vmatmul.mubr.bf16.gmra.mxu0 %v464
        %v570 = vpop.f32.mrf.mxu0
        %v571 = vadd.f32 %v434, %v570
        %v572 = vpop.f32.mrf.mxu0
        %v573 = vadd.f32 %v434, %v572
        %v574 = vpop.f32.mrf.mxu0
        %v575 = vadd.f32 %v439, %v574
        %v576 = vpop.f32.mrf.mxu0
        %v577 = vadd.f32 %v439, %v576
        %578 = vdwg.mxu0
        %v579 = vmax.f32 %v501, 0.0
        %v580 = vmax.f32 %v503, 0.0
        %v581 = vmax.f32 %v505, 0.0
        %v582 = vmax.f32 %v507, 0.0
        %v583 = vmax.f32 %v511, 0.0
        %v584 = vmax.f32 %v513, 0.0
        %v585 = vmax.f32 %v515, 0.0
        %v586 = vmax.f32 %v517, 0.0
        %v587 = vmax.f32 %v521, 0.0
        %v588 = vmax.f32 %v523, 0.0
        %v589 = vmax.f32 %v525, 0.0
        %v590 = vmax.f32 %v527, 0.0
        %v591 = vmax.f32 %v531, 0.0
        %v592 = vmax.f32 %v533, 0.0
        %v593 = vmax.f32 %v535, 0.0
        %v594 = vmax.f32 %v537, 0.0
        %v595 = vmax.f32 %v541, 0.0
        %v596 = vmax.f32 %v543, 0.0
        %v597 = vmax.f32 %v545, 0.0
        %v598 = vmax.f32 %v547, 0.0
        %v599 = vmax.f32 %v551, 0.0
        %v600 = vmax.f32 %v553, 0.0
        %v601 = vmax.f32 %v555, 0.0
        %v602 = vmax.f32 %v557, 0.0
        %v603 = vmax.f32 %v561, 0.0
        %v604 = vmax.f32 %v563, 0.0
        %v605 = vmax.f32 %v565, 0.0
        %v606 = vmax.f32 %v567, 0.0
        %v607 = vmax.f32 %v571, 0.0
        %v608 = vmax.f32 %v573, 0.0
        %v609 = vmax.f32 %v575, 0.0
        %v610 = vmax.f32 %v577, 0.0
        %v611 = vld [vmem:[%s3] sm:$0xff]
        %v612 = vld [vmem:[%s3 + $0x8] sm:$0xff]
        %v613 = vld [vmem:[%s3 + $0x10] sm:$0xff]
        %v614 = vld [vmem:[%s3 + $0x18] sm:$0xff]
        %v615 = vld [vmem:[%s3 + $0x20] sm:$0xff]
        %v616 = vld [vmem:[%s3 + $0x28] sm:$0xff]
        %v617 = vld [vmem:[%s3 + $0x30] sm:$0xff]
        %v618 = vld [vmem:[%s3 + $0x38] sm:$0xff]
        %v619 = vld [vmem:[%s3 + $0x40] sm:$0xff]
        %v620 = vld [vmem:[%s3 + $0x48] sm:$0xff]
        %v621 = vld [vmem:[%s3 + $0x50] sm:$0xff]
        %v622 = vld [vmem:[%s3 + $0x58] sm:$0xff]
        %v623 = vld [vmem:[%s3 + $0x60] sm:$0xff]
        %v624 = vld [vmem:[%s3 + $0x68] sm:$0xff]
        %v625 = vld [vmem:[%s3 + $0x70] sm:$0xff]
        %v626 = vld [vmem:[%s3 + $0x78] sm:$0xff]
        %v627 = vld [vmem:[%s3 + $0x80] sm:$0xff]
        %v628 = vld [vmem:[%s3 + $0x88] sm:$0xff]
        %v629 = vld [vmem:[%s3 + $0x90] sm:$0xff]
        %v630 = vld [vmem:[%s3 + $0x98] sm:$0xff]
        %v631 = vld [vmem:[%s3 + $0xa0] sm:$0xff]
        %v632 = vld [vmem:[%s3 + $0xa8] sm:$0xff]
        %v633 = vld [vmem:[%s3 + $0xb0] sm:$0xff]
        %v634 = vld [vmem:[%s3 + $0xb8] sm:$0xff]
        %v635 = vld [vmem:[%s3 + $0xc0] sm:$0xff]
        %v636 = vld [vmem:[%s3 + $0xc8] sm:$0xff]
        %v637 = vld [vmem:[%s3 + $0xd0] sm:$0xff]
        %v638 = vld [vmem:[%s3 + $0xd8] sm:$0xff]
        %v639 = vld [vmem:[%s3 + $0xe0] sm:$0xff]
        %v640 = vld [vmem:[%s3 + $0xe8] sm:$0xff]
        %v641 = vld [vmem:[%s3 + $0xf0] sm:$0xff]
        %v642 = vld [vmem:[%s3 + $0xf8] sm:$0xff]
        %v643 = vpack.c.bf16 %v612, %v611
        %v644 = vpack.c.bf16 %v614, %v613
        %v645 = vpack.c.bf16 %v616, %v615
        %v646 = vpack.c.bf16 %v618, %v617
        %v647 = vpack.c.bf16 %v620, %v619
        %v648 = vpack.c.bf16 %v622, %v621
        %v649 = vpack.c.bf16 %v624, %v623
        %v650 = vpack.c.bf16 %v626, %v625
        %v651 = vpack.c.bf16 %v628, %v627
        %v652 = vpack.c.bf16 %v630, %v629
        %v653 = vpack.c.bf16 %v632, %v631
        %v654 = vpack.c.bf16 %v634, %v633
        %v655 = vpack.c.bf16 %v636, %v635
        %v656 = vpack.c.bf16 %v638, %v637
        %v657 = vpack.c.bf16 %v640, %v639
        %v658 = vpack.c.bf16 %v642, %v641
        %v659 = vpack.c.bf16 %v581, %v579
        %v660 = vpack.c.bf16 %v582, %v580
        %v661 = vpack.c.bf16 %v585, %v583
        %v662 = vpack.c.bf16 %v586, %v584
        %v663 = vpack.c.bf16 %v589, %v587
        %v664 = vpack.c.bf16 %v590, %v588
        %v665 = vpack.c.bf16 %v593, %v591
        %v666 = vpack.c.bf16 %v594, %v592
        %v667 = vpack.c.bf16 %v597, %v595
        %v668 = vpack.c.bf16 %v598, %v596
        %v669 = vpack.c.bf16 %v601, %v599
        %v670 = vpack.c.bf16 %v602, %v600
        %v671 = vpack.c.bf16 %v605, %v603
        %v672 = vpack.c.bf16 %v606, %v604
        %v673 = vpack.c.bf16 %v609, %v607
        %v674 = vpack.c.bf16 %v610, %v608
        %v675 = vld [vmem:[%s4] sm:$0xff]
        %v676 = vld [vmem:[%s4 + $0x8] sm:$0xff]
        %v677 = vld [vmem:[%s4 + $0x10] sm:$0xff]
        %v678 = vld [vmem:[%s4 + $0x18] sm:$0xff]
        %v679 = vld [vmem:[%s4 + $0x20] sm:$0xff]
        %v680 = vld [vmem:[%s4 + $0x28] sm:$0xff]
        %v681 = vld [vmem:[%s4 + $0x30] sm:$0xff]
        %v682 = vld [vmem:[%s4 + $0x38] sm:$0xff]
        %v683 = vld [vmem:[%s4 + $0x40] sm:$0xff]
        %v684 = vld [vmem:[%s4 + $0x48] sm:$0xff]
        %v685 = vld [vmem:[%s4 + $0x50] sm:$0xff]
        %v686 = vld [vmem:[%s4 + $0x58] sm:$0xff]
        %v687 = vld [vmem:[%s4 + $0x60] sm:$0xff]
        %v688 = vld [vmem:[%s4 + $0x68] sm:$0xff]
        %v689 = vld [vmem:[%s4 + $0x70] sm:$0xff]
        %v690 = vld [vmem:[%s4 + $0x78] sm:$0xff]
        %v691 = vld [vmem:[%s4 + $0x80] sm:$0xff]
        %v692 = vld [vmem:[%s4 + $0x88] sm:$0xff]
        %v693 = vld [vmem:[%s4 + $0x90] sm:$0xff]
        %v694 = vld [vmem:[%s4 + $0x98] sm:$0xff]
        %v695 = vld [vmem:[%s4 + $0xa0] sm:$0xff]
        %v696 = vld [vmem:[%s4 + $0xa8] sm:$0xff]
        %v697 = vld [vmem:[%s4 + $0xb0] sm:$0xff]
        %v698 = vld [vmem:[%s4 + $0xb8] sm:$0xff]
        %v699 = vld [vmem:[%s4 + $0xc0] sm:$0xff]
        %v700 = vld [vmem:[%s4 + $0xc8] sm:$0xff]
        %v701 = vld [vmem:[%s4 + $0xd0] sm:$0xff]
        %v702 = vld [vmem:[%s4 + $0xd8] sm:$0xff]
        %v703 = vld [vmem:[%s4 + $0xe0] sm:$0xff]
        %v704 = vld [vmem:[%s4 + $0xe8] sm:$0xff]
        %v705 = vld [vmem:[%s4 + $0xf0] sm:$0xff]
        %v706 = vld [vmem:[%s4 + $0xf8] sm:$0xff]
        %708 = vset.pattern.permute.xlu0 0
        %709 = vperm.xlu0 %708, %v675
        %v710 = vpop.permute.xlu0 %709
        %713 = vset.pattern.permute.xlu0 0
        %714 = vperm.xlu0 %713, %v676
        %v715 = vpop.permute.xlu0 %714
        %718 = vset.pattern.permute.xlu0 0
        %719 = vperm.xlu0 %718, %v677
        %v720 = vpop.permute.xlu0 %719
        %723 = vset.pattern.permute.xlu0 0
        %724 = vperm.xlu0 %723, %v678
        %v725 = vpop.permute.xlu0 %724
        %728 = vset.pattern.permute.xlu0 0
        %729 = vperm.xlu0 %728, %v679
        %v730 = vpop.permute.xlu0 %729
        %733 = vset.pattern.permute.xlu0 0
        %734 = vperm.xlu0 %733, %v680
        %v735 = vpop.permute.xlu0 %734
        %738 = vset.pattern.permute.xlu0 0
        %739 = vperm.xlu0 %738, %v681
        %v740 = vpop.permute.xlu0 %739
        %743 = vset.pattern.permute.xlu0 0
        %744 = vperm.xlu0 %743, %v682
        %v745 = vpop.permute.xlu0 %744
        %748 = vset.pattern.permute.xlu0 0
        %749 = vperm.xlu0 %748, %v683
        %v750 = vpop.permute.xlu0 %749
        %753 = vset.pattern.permute.xlu0 0
        %754 = vperm.xlu0 %753, %v684
        %v755 = vpop.permute.xlu0 %754
        %758 = vset.pattern.permute.xlu0 0
        %759 = vperm.xlu0 %758, %v685
        %v760 = vpop.permute.xlu0 %759
        %763 = vset.pattern.permute.xlu0 0
        %764 = vperm.xlu0 %763, %v686
        %v765 = vpop.permute.xlu0 %764
        %768 = vset.pattern.permute.xlu0 0
        %769 = vperm.xlu0 %768, %v687
        %v770 = vpop.permute.xlu0 %769
        %773 = vset.pattern.permute.xlu0 0
        %774 = vperm.xlu0 %773, %v688
        %v775 = vpop.permute.xlu0 %774
        %778 = vset.pattern.permute.xlu0 0
        %779 = vperm.xlu0 %778, %v689
        %v780 = vpop.permute.xlu0 %779
        %783 = vset.pattern.permute.xlu0 0
        %784 = vperm.xlu0 %783, %v690
        %v785 = vpop.permute.xlu0 %784
        %788 = vset.pattern.permute.xlu0 0
        %789 = vperm.xlu0 %788, %v691
        %v790 = vpop.permute.xlu0 %789
        %793 = vset.pattern.permute.xlu0 0
        %794 = vperm.xlu0 %793, %v692
        %v795 = vpop.permute.xlu0 %794
        %798 = vset.pattern.permute.xlu0 0
        %799 = vperm.xlu0 %798, %v693
        %v800 = vpop.permute.xlu0 %799
        %803 = vset.pattern.permute.xlu0 0
        %804 = vperm.xlu0 %803, %v694
        %v805 = vpop.permute.xlu0 %804
        %808 = vset.pattern.permute.xlu0 0
        %809 = vperm.xlu0 %808, %v695
        %v810 = vpop.permute.xlu0 %809
        %813 = vset.pattern.permute.xlu0 0
        %814 = vperm.xlu0 %813, %v696
        %v815 = vpop.permute.xlu0 %814
        %818 = vset.pattern.permute.xlu0 0
        %819 = vperm.xlu0 %818, %v697
        %v820 = vpop.permute.xlu0 %819
        %823 = vset.pattern.permute.xlu0 0
        %824 = vperm.xlu0 %823, %v698
        %v825 = vpop.permute.xlu0 %824
        %828 = vset.pattern.permute.xlu0 0
        %829 = vperm.xlu0 %828, %v699
        %v830 = vpop.permute.xlu0 %829
        %833 = vset.pattern.permute.xlu0 0
        %834 = vperm.xlu0 %833, %v700
        %v835 = vpop.permute.xlu0 %834
        %838 = vset.pattern.permute.xlu0 0
        %839 = vperm.xlu0 %838, %v701
        %v840 = vpop.permute.xlu0 %839
        %843 = vset.pattern.permute.xlu0 0
        %844 = vperm.xlu0 %843, %v702
        %v845 = vpop.permute.xlu0 %844
        %848 = vset.pattern.permute.xlu0 0
        %849 = vperm.xlu0 %848, %v703
        %v850 = vpop.permute.xlu0 %849
        %853 = vset.pattern.permute.xlu0 0
        %854 = vperm.xlu0 %853, %v704
        %v855 = vpop.permute.xlu0 %854
        %858 = vset.pattern.permute.xlu0 0
        %859 = vperm.xlu0 %858, %v705
        %v860 = vpop.permute.xlu0 %859
        %863 = vset.pattern.permute.xlu0 0
        %864 = vperm.xlu0 %863, %v706
        %v865 = vpop.permute.xlu0 %864
        %867 = vmatprep.subr.bf16.mxu0 %v674
        %868 = vmatpush1.bf16.msra.mxu0 %v673
        %869 = vmatprep.subr.bf16.mxu0 %v672
        %870 = vmatpush1.bf16.msra.mxu0 %v671
        %871 = vmatprep.subr.bf16.mxu0 %v670
        %872 = vmatpush1.bf16.msra.mxu0 %v669
        %873 = vmatprep.subr.bf16.mxu0 %v668
        %874 = vmatpush1.bf16.msra.mxu0 %v667
        %875 = vmatprep.subr.bf16.mxu0 %v666
        %876 = vmatpush1.bf16.msra.mxu0 %v665
        %877 = vmatprep.subr.bf16.mxu0 %v664
        %878 = vmatpush1.bf16.msra.mxu0 %v663
        %879 = vmatprep.subr.bf16.mxu0 %v662
        %880 = vmatpush1.bf16.msra.mxu0 %v661
        %881 = vmatprep.subr.bf16.mxu0 %v660
        %882 = vmatpush1.bf16.msra.mxu0 %v659
        %883 = vmatprep.subr.bf16.mxu0 0
        %884 = vmatpush2.bf16.msra.mxu0 0
        %885 = vmatprep.subr.bf16.mxu0 0
        %886 = vmatpush2.bf16.msra.mxu0 0
        %887 = vmatprep.subr.bf16.mxu0 0
        %888 = vmatpush2.bf16.msra.mxu0 0
        %889 = vmatprep.subr.bf16.mxu0 0
        %890 = vmatpush2.bf16.msra.mxu0 0
        %891 = vmatprep.subr.bf16.mxu0 0
        %892 = vmatpush2.bf16.msra.mxu0 0
        %893 = vmatprep.subr.bf16.mxu0 0
        %894 = vmatpush2.bf16.msra.mxu0 0
        %895 = vmatprep.subr.bf16.mxu0 0
        %896 = vmatpush2.bf16.msra.mxu0 0
        %897 = vmatprep.subr.bf16.mxu0 0
        %898 = vmatpush2.bf16.msra.mxu0 0
        %899 = vmatprep.mubr.bf16.mxu0 0
        %900 = vmatmul.mubr.bf16.gmra.mxu0 %v643
        %v901 = vpop.f32.mrf.mxu0
        %v902 = vadd.f32 %v710, %v901
        %v903 = vpop.f32.mrf.mxu0
        %v904 = vadd.f32 %v710, %v903
        %v905 = vpop.f32.mrf.mxu0
        %v906 = vadd.f32 %v715, %v905
        %v907 = vpop.f32.mrf.mxu0
        %v908 = vadd.f32 %v715, %v907
        %909 = vmatprep.mubr.bf16.mxu0 0
        %910 = vmatmul.mubr.bf16.gmra.mxu0 %v644
        %v911 = vpop.f32.mrf.mxu0
        %v912 = vadd.f32 %v720, %v911
        %v913 = vpop.f32.mrf.mxu0
        %v914 = vadd.f32 %v720, %v913
        %v915 = vpop.f32.mrf.mxu0
        %v916 = vadd.f32 %v725, %v915
        %v917 = vpop.f32.mrf.mxu0
        %v918 = vadd.f32 %v725, %v917
        %919 = vmatprep.mubr.bf16.mxu0 0
        %920 = vmatmul.mubr.bf16.gmra.mxu0 %v645
        %v921 = vpop.f32.mrf.mxu0
        %v922 = vadd.f32 %v730, %v921
        %v923 = vpop.f32.mrf.mxu0
        %v924 = vadd.f32 %v730, %v923
        %v925 = vpop.f32.mrf.mxu0
        %v926 = vadd.f32 %v735, %v925
        %v927 = vpop.f32.mrf.mxu0
        %v928 = vadd.f32 %v735, %v927
        %929 = vmatprep.mubr.bf16.mxu0 0
        %930 = vmatmul.mubr.bf16.gmra.mxu0 %v646
        %v931 = vpop.f32.mrf.mxu0
        %v932 = vadd.f32 %v740, %v931
        %v933 = vpop.f32.mrf.mxu0
        %v934 = vadd.f32 %v740, %v933
        %v935 = vpop.f32.mrf.mxu0
        %v936 = vadd.f32 %v745, %v935
        %v937 = vpop.f32.mrf.mxu0
        %v938 = vadd.f32 %v745, %v937
        %939 = vmatprep.mubr.bf16.mxu0 0
        %940 = vmatmul.mubr.bf16.gmra.mxu0 %v647
        %v941 = vpop.f32.mrf.mxu0
        %v942 = vadd.f32 %v750, %v941
        %v943 = vpop.f32.mrf.mxu0
        %v944 = vadd.f32 %v750, %v943
        %v945 = vpop.f32.mrf.mxu0
        %v946 = vadd.f32 %v755, %v945
        %v947 = vpop.f32.mrf.mxu0
        %v948 = vadd.f32 %v755, %v947
        %949 = vmatprep.mubr.bf16.mxu0 0
        %950 = vmatmul.mubr.bf16.gmra.mxu0 %v648
        %v951 = vpop.f32.mrf.mxu0
        %v952 = vadd.f32 %v760, %v951
        %v953 = vpop.f32.mrf.mxu0
        %v954 = vadd.f32 %v760, %v953
        %v955 = vpop.f32.mrf.mxu0
        %v956 = vadd.f32 %v765, %v955
        %v957 = vpop.f32.mrf.mxu0
        %v958 = vadd.f32 %v765, %v957
        %959 = vmatprep.mubr.bf16.mxu0 0
        %960 = vmatmul.mubr.bf16.gmra.mxu0 %v649
        %v961 = vpop.f32.mrf.mxu0
        %v962 = vadd.f32 %v770, %v961
        %v963 = vpop.f32.mrf.mxu0
        %v964 = vadd.f32 %v770, %v963
        %v965 = vpop.f32.mrf.mxu0
        %v966 = vadd.f32 %v775, %v965
        %v967 = vpop.f32.mrf.mxu0
        %v968 = vadd.f32 %v775, %v967
        %969 = vmatprep.mubr.bf16.mxu0 0
        %970 = vmatmul.mubr.bf16.gmra.mxu0 %v650
        %v971 = vpop.f32.mrf.mxu0
        %v972 = vadd.f32 %v780, %v971
        %v973 = vpop.f32.mrf.mxu0
        %v974 = vadd.f32 %v780, %v973
        %v975 = vpop.f32.mrf.mxu0
        %v976 = vadd.f32 %v785, %v975
        %v977 = vpop.f32.mrf.mxu0
        %v978 = vadd.f32 %v785, %v977
        %979 = vmatprep.mubr.bf16.mxu0 0
        %980 = vmatmul.mubr.bf16.gmra.mxu0 %v651
        %v981 = vpop.f32.mrf.mxu0
        %v982 = vadd.f32 %v790, %v981
        %v983 = vpop.f32.mrf.mxu0
        %v984 = vadd.f32 %v790, %v983
        %v985 = vpop.f32.mrf.mxu0
        %v986 = vadd.f32 %v795, %v985
        %v987 = vpop.f32.mrf.mxu0
        %v988 = vadd.f32 %v795, %v987
        %989 = vmatprep.mubr.bf16.mxu0 0
        %990 = vmatmul.mubr.bf16.gmra.mxu0 %v652
        %v991 = vpop.f32.mrf.mxu0
        %v992 = vadd.f32 %v800, %v991
        %v993 = vpop.f32.mrf.mxu0
        %v994 = vadd.f32 %v800, %v993
        %v995 = vpop.f32.mrf.mxu0
        %v996 = vadd.f32 %v805, %v995
        %v997 = vpop.f32.mrf.mxu0
        %v998 = vadd.f32 %v805, %v997
        %999 = vmatprep.mubr.bf16.mxu0 0
        %1000 = vmatmul.mubr.bf16.gmra.mxu0 %v653
        %v1001 = vpop.f32.mrf.mxu0
        %v1002 = vadd.f32 %v810, %v1001
        %v1003 = vpop.f32.mrf.mxu0
        %v1004 = vadd.f32 %v810, %v1003
        %v1005 = vpop.f32.mrf.mxu0
        %v1006 = vadd.f32 %v815, %v1005
        %v1007 = vpop.f32.mrf.mxu0
        %v1008 = vadd.f32 %v815, %v1007
        %1009 = vmatprep.mubr.bf16.mxu0 0
        %1010 = vmatmul.mubr.bf16.gmra.mxu0 %v654
        %v1011 = vpop.f32.mrf.mxu0
        %v1012 = vadd.f32 %v820, %v1011
        %v1013 = vpop.f32.mrf.mxu0
        %v1014 = vadd.f32 %v820, %v1013
        %v1015 = vpop.f32.mrf.mxu0
        %v1016 = vadd.f32 %v825, %v1015
        %v1017 = vpop.f32.mrf.mxu0
        %v1018 = vadd.f32 %v825, %v1017
        %1019 = vmatprep.mubr.bf16.mxu0 0
        %1020 = vmatmul.mubr.bf16.gmra.mxu0 %v655
        %v1021 = vpop.f32.mrf.mxu0
        %v1022 = vadd.f32 %v830, %v1021
        %v1023 = vpop.f32.mrf.mxu0
        %v1024 = vadd.f32 %v830, %v1023
        %v1025 = vpop.f32.mrf.mxu0
        %v1026 = vadd.f32 %v835, %v1025
        %v1027 = vpop.f32.mrf.mxu0
        %v1028 = vadd.f32 %v835, %v1027
        %1029 = vmatprep.mubr.bf16.mxu0 0
        %1030 = vmatmul.mubr.bf16.gmra.mxu0 %v656
        %v1031 = vpop.f32.mrf.mxu0
        %v1032 = vadd.f32 %v840, %v1031
        %v1033 = vpop.f32.mrf.mxu0
        %v1034 = vadd.f32 %v840, %v1033
        %v1035 = vpop.f32.mrf.mxu0
        %v1036 = vadd.f32 %v845, %v1035
        %v1037 = vpop.f32.mrf.mxu0
        %v1038 = vadd.f32 %v845, %v1037
        %1039 = vmatprep.mubr.bf16.mxu0 0
        %1040 = vmatmul.mubr.bf16.gmra.mxu0 %v657
        %v1041 = vpop.f32.mrf.mxu0
        %v1042 = vadd.f32 %v850, %v1041
        %v1043 = vpop.f32.mrf.mxu0
        %v1044 = vadd.f32 %v850, %v1043
        %v1045 = vpop.f32.mrf.mxu0
        %v1046 = vadd.f32 %v855, %v1045
        %v1047 = vpop.f32.mrf.mxu0
        %v1048 = vadd.f32 %v855, %v1047
        %1049 = vmatprep.mubr.bf16.mxu0 0
        %1050 = vmatmul.mubr.bf16.gmra.mxu0 %v658
        %v1051 = vpop.f32.mrf.mxu0
        %v1052 = vadd.f32 %v860, %v1051
        %v1053 = vpop.f32.mrf.mxu0
        %v1054 = vadd.f32 %v860, %v1053
        %v1055 = vpop.f32.mrf.mxu0
        %v1056 = vadd.f32 %v865, %v1055
        %v1057 = vpop.f32.mrf.mxu0
        %v1058 = vadd.f32 %v865, %v1057
        %1059 = vdwg.mxu0
        %v1060 = vmax.f32 %v902, 0.0
        %v1061 = vmax.f32 %v904, 0.0
        %v1062 = vmax.f32 %v906, 0.0
        %v1063 = vmax.f32 %v908, 0.0
        %v1064 = vmax.f32 %v912, 0.0
        %v1065 = vmax.f32 %v914, 0.0
        %v1066 = vmax.f32 %v916, 0.0
        %v1067 = vmax.f32 %v918, 0.0
        %v1068 = vmax.f32 %v922, 0.0
        %v1069 = vmax.f32 %v924, 0.0
        %v1070 = vmax.f32 %v926, 0.0
        %v1071 = vmax.f32 %v928, 0.0
        %v1072 = vmax.f32 %v932, 0.0
        %v1073 = vmax.f32 %v934, 0.0
        %v1074 = vmax.f32 %v936, 0.0
        %v1075 = vmax.f32 %v938, 0.0
        %v1076 = vmax.f32 %v942, 0.0
        %v1077 = vmax.f32 %v944, 0.0
        %v1078 = vmax.f32 %v946, 0.0
        %v1079 = vmax.f32 %v948, 0.0
        %v1080 = vmax.f32 %v952, 0.0
        %v1081 = vmax.f32 %v954, 0.0
        %v1082 = vmax.f32 %v956, 0.0
        %v1083 = vmax.f32 %v958, 0.0
        %v1084 = vmax.f32 %v962, 0.0
        %v1085 = vmax.f32 %v964, 0.0
        %v1086 = vmax.f32 %v966, 0.0
        %v1087 = vmax.f32 %v968, 0.0
        %v1088 = vmax.f32 %v972, 0.0
        %v1089 = vmax.f32 %v974, 0.0
        %v1090 = vmax.f32 %v976, 0.0
        %v1091 = vmax.f32 %v978, 0.0
        %v1092 = vmax.f32 %v982, 0.0
        %v1093 = vmax.f32 %v984, 0.0
        %v1094 = vmax.f32 %v986, 0.0
        %v1095 = vmax.f32 %v988, 0.0
        %v1096 = vmax.f32 %v992, 0.0
        %v1097 = vmax.f32 %v994, 0.0
        %v1098 = vmax.f32 %v996, 0.0
        %v1099 = vmax.f32 %v998, 0.0
        %v1100 = vmax.f32 %v1002, 0.0
        %v1101 = vmax.f32 %v1004, 0.0
        %v1102 = vmax.f32 %v1006, 0.0
        %v1103 = vmax.f32 %v1008, 0.0
        %v1104 = vmax.f32 %v1012, 0.0
        %v1105 = vmax.f32 %v1014, 0.0
        %v1106 = vmax.f32 %v1016, 0.0
        %v1107 = vmax.f32 %v1018, 0.0
        %v1108 = vmax.f32 %v1022, 0.0
        %v1109 = vmax.f32 %v1024, 0.0
        %v1110 = vmax.f32 %v1026, 0.0
        %v1111 = vmax.f32 %v1028, 0.0
        %v1112 = vmax.f32 %v1032, 0.0
        %v1113 = vmax.f32 %v1034, 0.0
        %v1114 = vmax.f32 %v1036, 0.0
        %v1115 = vmax.f32 %v1038, 0.0
        %v1116 = vmax.f32 %v1042, 0.0
        %v1117 = vmax.f32 %v1044, 0.0
        %v1118 = vmax.f32 %v1046, 0.0
        %v1119 = vmax.f32 %v1048, 0.0
        %v1120 = vmax.f32 %v1052, 0.0
        %v1121 = vmax.f32 %v1054, 0.0
        %v1122 = vmax.f32 %v1056, 0.0
        %v1123 = vmax.f32 %v1058, 0.0
        %v1124 = vld [vmem:[%s5] sm:$0xff]
        %v1125 = vld [vmem:[%s5 + $0x8] sm:$0xff]
        %v1126 = vld [vmem:[%s5 + $0x10] sm:$0xff]
        %v1127 = vld [vmem:[%s5 + $0x18] sm:$0xff]
        %v1128 = vpack.c.bf16 %v1126, %v1124
        %v1129 = vpack.c.bf16 %v1127, %v1125
        %v1130 = vpack.c.bf16 %v1062, %v1060
        %v1131 = vpack.c.bf16 %v1063, %v1061
        %v1132 = vpack.c.bf16 %v1066, %v1064
        %v1133 = vpack.c.bf16 %v1067, %v1065
        %v1134 = vpack.c.bf16 %v1070, %v1068
        %v1135 = vpack.c.bf16 %v1071, %v1069
        %v1136 = vpack.c.bf16 %v1074, %v1072
        %v1137 = vpack.c.bf16 %v1075, %v1073
        %v1138 = vpack.c.bf16 %v1078, %v1076
        %v1139 = vpack.c.bf16 %v1079, %v1077
        %v1140 = vpack.c.bf16 %v1082, %v1080
        %v1141 = vpack.c.bf16 %v1083, %v1081
        %v1142 = vpack.c.bf16 %v1086, %v1084
        %v1143 = vpack.c.bf16 %v1087, %v1085
        %v1144 = vpack.c.bf16 %v1090, %v1088
        %v1145 = vpack.c.bf16 %v1091, %v1089
        %v1146 = vpack.c.bf16 %v1094, %v1092
        %v1147 = vpack.c.bf16 %v1095, %v1093
        %v1148 = vpack.c.bf16 %v1098, %v1096
        %v1149 = vpack.c.bf16 %v1099, %v1097
        %v1150 = vpack.c.bf16 %v1102, %v1100
        %v1151 = vpack.c.bf16 %v1103, %v1101
        %v1152 = vpack.c.bf16 %v1106, %v1104
        %v1153 = vpack.c.bf16 %v1107, %v1105
        %v1154 = vpack.c.bf16 %v1110, %v1108
        %v1155 = vpack.c.bf16 %v1111, %v1109
        %v1156 = vpack.c.bf16 %v1114, %v1112
        %v1157 = vpack.c.bf16 %v1115, %v1113
        %v1158 = vpack.c.bf16 %v1118, %v1116
        %v1159 = vpack.c.bf16 %v1119, %v1117
        %v1160 = vpack.c.bf16 %v1122, %v1120
        %v1161 = vpack.c.bf16 %v1123, %v1121
        %v1162 = vld [vmem:[%s6] sm:$0xff]
        %v1163 = vld [vmem:[%s6 + $0x8] sm:$0xff]
        %1165 = vset.pattern.permute.xlu0 0
        %1166 = vperm.xlu0 %1165, %v1162
        %v1167 = vpop.permute.xlu0 %1166
        %1170 = vset.pattern.permute.xlu0 0
        %1171 = vperm.xlu0 %1170, %v1163
        %v1172 = vpop.permute.xlu0 %1171
        %1174 = vmatprep.subr.bf16.mxu0 %v1145
        %1175 = vmatpush1.bf16.msra.mxu0 %v1144
        %1176 = vmatprep.subr.bf16.mxu0 %v1143
        %1177 = vmatpush1.bf16.msra.mxu0 %v1142
        %1178 = vmatprep.subr.bf16.mxu0 %v1141
        %1179 = vmatpush1.bf16.msra.mxu0 %v1140
        %1180 = vmatprep.subr.bf16.mxu0 %v1139
        %1181 = vmatpush1.bf16.msra.mxu0 %v1138
        %1182 = vmatprep.subr.bf16.mxu0 %v1137
        %1183 = vmatpush1.bf16.msra.mxu0 %v1136
        %1184 = vmatprep.subr.bf16.mxu0 %v1135
        %1185 = vmatpush1.bf16.msra.mxu0 %v1134
        %1186 = vmatprep.subr.bf16.mxu0 %v1133
        %1187 = vmatpush1.bf16.msra.mxu0 %v1132
        %1188 = vmatprep.subr.bf16.mxu0 %v1131
        %1189 = vmatpush1.bf16.msra.mxu0 %v1130
        %1190 = vmatprep.subr.bf16.mxu0 %v1161
        %1191 = vmatpush2.bf16.msra.mxu0 %v1160
        %1192 = vmatprep.subr.bf16.mxu0 %v1159
        %1193 = vmatpush2.bf16.msra.mxu0 %v1158
        %1194 = vmatprep.subr.bf16.mxu0 %v1157
        %1195 = vmatpush2.bf16.msra.mxu0 %v1156
        %1196 = vmatprep.subr.bf16.mxu0 %v1155
        %1197 = vmatpush2.bf16.msra.mxu0 %v1154
        %1198 = vmatprep.subr.bf16.mxu0 %v1153
        %1199 = vmatpush2.bf16.msra.mxu0 %v1152
        %1200 = vmatprep.subr.bf16.mxu0 %v1151
        %1201 = vmatpush2.bf16.msra.mxu0 %v1150
        %1202 = vmatprep.subr.bf16.mxu0 %v1149
        %1203 = vmatpush2.bf16.msra.mxu0 %v1148
        %1204 = vmatprep.subr.bf16.mxu0 %v1147
        %1205 = vmatpush2.bf16.msra.mxu0 %v1146
        %1206 = vmatprep.mubr.bf16.mxu0 %v1129
        %1207 = vmatmul.mubr.bf16.gmra.mxu0 %v1128
        %v1208 = vpop.f32.mrf.mxu0
        %v1209 = vadd.f32 %v1167, %v1208
        %v1210 = vpop.f32.mrf.mxu0
        %v1211 = vadd.f32 %v1167, %v1210
        %v1212 = vpop.f32.mrf.mxu0
        %v1213 = vadd.f32 %v1172, %v1212
        %v1214 = vpop.f32.mrf.mxu0
        %v1215 = vadd.f32 %v1172, %v1214
        %1216 = vdwg.mxu0
        %v1217 = vlaneseq
        %v1218 = vshrl.u32 %v1217, 7
        %v1219 = vadd.s32 %v1218, 8
        %vm1220 = vcmp.lt.s32.totalorder %v1218, 3
        %vm1221 = vcmp.lt.s32.totalorder %v1219, 3
        %v1222 = vmax.f32 %v1209, 0.0
        %v1223 = vmax.f32 %v1211, 0.0
        %v1224 = vmax.f32 %v1213, 0.0
        %v1225 = vmax.f32 %v1215, 0.0
        %v1226 = vsel %vm1220, 1, 0
        %v1227 = vsel %vm1221, 1, 0
        %vm1228 = vcmp.eq.s32.totalorder %v1226, 1
        %vm1229 = vcmp.eq.s32.totalorder %v1227, 1
        %v1230 = vsel %vm1228, %v1222, %v1209
        %v1231 = vsel %vm1228, %v1223, %v1211
        %v1232 = vsel %vm1229, %v1224, %v1213
        %v1233 = vsel %vm1229, %v1225, %v1215
        %1234 = vst [vmem:[%s296] sm:$0xff] %v1230
        %1235 = vst [vmem:[%s296 + $0x8] sm:$0xff] %v1231
        %1236 = vst [vmem:[%s296 + $0x10] sm:$0xff] %v1232
        %1237 = vst [vmem:[%s296 + $0x18] sm:$0xff] %v1233
        %s1238 = sand.u32 %s197, 1
        %s1239 = scalar_lea.sflag [#allocation3], %s1238
        %s1240 = sand.u32 %s197, 1
        %s1241 = smul.addr %s1240, 32
        %s1242 = scalar_lea.vmem [#allocation2], %s1241
        // Predicated region
        $region49: #{tpu_custom_call.1} parent=47 // pred_check
          %p1243 = pneg %p207
        $region50: #{tpu_custom_call.1} parent=47 // pred_check_branch
          %1245 = sbr.rel (%p1243) target = $region52
        $region51: #{tpu_custom_call.1} parent=47 // pred_region
          %s1246 = smul.u32 2, %s26
          %s1248 = ssub.s32 512, 512
          %1249 = vsyncadd %s1239, %s1248
          %s1250 = smul.addr %s25, 4
          %s1251 = sadd.s32 %s1246, %s1250
          %s1252 = smul.addr %s1251, 128
          %s1253 = scalar_lea.hbm %s7, %s1252
          %s1254 = sshll.u32 %s1242, 4
          %s1255 = int_to_ptr.vmem [resolvable:$true] %s1254
          %1260 = dma.vmem_to_hbm [thread:$0]  %s1255, 512, %s1253, %s1239, 256, 256, 16
        $region52: #{tpu_custom_call.1} parent=47 // pred_fallthru
          _
      $region48: #{tpu_custom_call.1} parent=5 // pred_fallthru
        _
      %p1261 = scmp.le.s32.totalorder 2, %s16
      // Predicated region
      $region53: #{tpu_custom_call.1} parent=5 // pred_check
        %p1262 = pneg %p1261
      $region54: #{tpu_custom_call.1} parent=5 // pred_check_branch
        %1264 = sbr.rel (%p1262) target = $region56
      $region55: #{tpu_custom_call.1} parent=5 // pred_region
        %s1265 = ssub.s32 %s16, 2
        // Predicated region
        $region57: #{tpu_custom_call.1} parent=55 // pred_check
          %p1266 = pneg %p213
        $region58: #{tpu_custom_call.1} parent=55 // pred_check_branch
          %1268 = sbr.rel (%p1266) target = $region60
        $region59: #{tpu_custom_call.1} parent=55 // pred_region
          %s1269 = sand.u32 %s198, 1
          %s1270 = scalar_lea.sflag [#allocation3], %s1269
          %s1271 = sand.u32 %s198, 1
          %s1272 = smul.addr %s1271, 32
          %s1273 = scalar_lea.vmem [#allocation2], %s1272
          %1274 = dma.done %s1270, 512
        $region60: #{tpu_custom_call.1} parent=55 // pred_fallthru
          _
      $region56: #{tpu_custom_call.1} parent=5 // pred_fallthru
        _
    $region6: #{tpu_custom_call.1} parent=1 // loop_footer
      %s20 = sadd.s32 1, %s16
    $region7: #{tpu_custom_call.1} parent=1 // loop_footer_branch
      %15 = sbr.rel target = $region3
    $region8: #{tpu_custom_call.1} parent=1 // loop_exit
      _
    %1275 = vsyncpa [#allocation3], 1
    %s1276 = scalar_lea.sflag [#allocation3], 1
    %1277 = vsyncpa %s1276, 1

</llo_original>
